<compile_context>
chip_gen: v5e
topology: v5e:2x2
jax: 0.10.0
libtpu: 0.0.40
codegen_flags: <defaults>
</compile_context>

<pallas_src>
import jax
import jax.numpy as jnp
from jax import lax
from jax.experimental import pallas as pl
from jax.experimental.pallas import tpu as pltpu


def _crf_loss_kernel(emis_ref, meta_ref, start_ref, end_ref, trans_ref,
                     out_ref, alpha_ref, num_ref, prev_row_ref, last_oh_ref):
    B_blk, T_blk, C = emis_ref.shape
    tb = pl.program_id(1)
    first = tb == 0
    last = tb == pl.num_programs(1) - 1

    start = start_ref[...]                        # [1, C]
    end = end_ref[...]                            # [1, C]
    trans = trans_ref[...]                        # [C, C]

    em = emis_ref[...]                            # [B_blk, T_blk, C] f32
    meta = meta_ref[...]                          # [B_blk, T_blk, 2] i32
    labels = meta[:, :, 0:1]                      # [B_blk, T_blk, 1]
    mask_i = meta[:, :, 1:2]                      # [B_blk, T_blk, 1]
    maskf = mask_i.astype(jnp.float32)

    c_iota = lax.broadcasted_iota(jnp.int32, (B_blk, T_blk, C), 2)
    oh = (labels == c_iota).astype(jnp.float32)   # [B_blk, T_blk, C]

    @pl.when(first)
    def _():
        alpha_ref[...] = jnp.zeros_like(alpha_ref)
        num_ref[...] = jnp.zeros_like(num_ref)
        last_oh_ref[...] = jnp.zeros_like(last_oh_ref)
        # "previous-tag transition row" for the very first step is start_transitions
        prev_row_ref[...] = jnp.broadcast_to(start, (B_blk, C))

    # ---------------- gold (numerator) score: vectorized over the block ----
    # q[b, t, :] = trans[labels[b, t], :]  via one one-hot MXU matmul
    q = jnp.dot(oh.reshape(B_blk * T_blk, C), trans,
                preferred_element_type=jnp.float32).reshape(B_blk, T_blk, C)
    e_sel = jnp.sum(em * oh, axis=2, keepdims=True)                  # [B_blk, T_blk, 1]

    prev_row = prev_row_ref[...]                                     # [B_blk, C]
    t0_sel = jnp.sum(prev_row * oh[:, 0, :], axis=1, keepdims=True)  # [B_blk, 1]
    w0 = jnp.where(first, 1.0, maskf[:, 0, :])    # torchcrf: t=0 term is unmasked
    contrib = w0 * (e_sel[:, 0, :] + t0_sel)                         # [B_blk, 1]
    if T_blk > 1:
        t_sel = jnp.sum(q[:, :-1, :] * oh[:, 1:, :], axis=2, keepdims=True)
        contrib = contrib + jnp.sum(maskf[:, 1:, :] * (e_sel[:, 1:, :] + t_sel),
                                    axis=1)
    num_new = num_ref[...] + contrib
    num_ref[...] = num_new
    # carry trans[raw last label of this block, :] for the next block's t=0 term
    prev_row_ref[...] = q[:, T_blk - 1, :]

    # ---------------- one-hot of the tag at the last valid position --------
    t_iota = lax.broadcasted_iota(jnp.int32, (B_blk, T_blk, 1), 1)
    pos = (t_iota + 1) * mask_i                                      # [B_blk, T_blk, 1]
    last_pos = jnp.max(pos, axis=1, keepdims=True)                   # [B_blk, 1, 1]
    sel = (t_iota == (last_pos - 1)).astype(jnp.float32)
    last_oh_blk = jnp.sum(sel * oh, axis=1)                          # [B_blk, C]
    has_valid = last_pos[:, 0, :] > 0                                # [B_blk, 1]
    last_oh_new = jnp.where(has_valid, last_oh_blk, last_oh_ref[...])
    last_oh_ref[...] = last_oh_new

    # ---------------- forward algorithm (only sequential part) -------------
    trans3 = trans[None, :, :]                                       # hoisted
    alpha = alpha_ref[...]                                           # [B_blk, C]
    for t in range(T_blk):                                           # static unroll
        e_t = em[:, t, :]                                            # [B_blk, C]
        m_t = maskf[:, t, :]                                         # [B_blk, 1]
        sc = alpha[:, :, None] + trans3                              # [B_blk, C, C]
        smax = jnp.max(sc, axis=1)                                   # [B_blk, C]
        lse = jnp.log(jnp.sum(jnp.exp(sc - smax[:, None, :]), axis=1)) + smax
        nxt = jnp.where(m_t > 0.0, lse + e_t, alpha)                 # e_t outside LSE
        if t == 0:
            nxt = jnp.where(first, start + e_t, nxt)                 # global t = 0
        alpha = nxt
    alpha_ref[...] = alpha

    # ---------------- finalize on the last time block -----------------------
    @pl.when(last)
    def _():
        numer = num_new + jnp.sum(end * last_oh_new, axis=1, keepdims=True)
        af = alpha + end                                             # [B_blk, C]
        amax = jnp.max(af, axis=1, keepdims=True)
        logz = jnp.log(jnp.sum(jnp.exp(af - amax), axis=1, keepdims=True)) + amax
        llh = numer - logz                                           # [B_blk, 1]
        out_ref[...] = jnp.sum(llh, axis=0, keepdims=True).reshape(1, 1, 1)


def _pick_time_block(T, max_block):
    if T <= max_block:
        return T
    for cand in range(min(max_block, T), 7, -1):
        if T % cand == 0 and cand % 8 == 0:       # (8,128) sublane constraint
            return cand
    return T


def crf_loss(logits, labels, input_ids, start_transitions, end_transitions,
             transitions, pad_token_id=0, *, time_block=32, batch_block=1):
    """logits [B,T,C], labels [B,T], input_ids [B,T] -> scalar CRF NLL (mean)."""
    B, T, C = logits.shape
    emis = logits.astype(jnp.float32)                                 # [B, T, C], no transpose
    mask = (input_ids != pad_token_id).astype(jnp.int32)              # [B, T]
    meta = jnp.stack([labels.astype(jnp.int32), mask], axis=-1)       # [B, T, 2]
    start = start_transitions.reshape(1, C).astype(jnp.float32)
    end = end_transitions.reshape(1, C).astype(jnp.float32)
    trans = transitions.astype(jnp.float32)

    t_blk = _pick_time_block(T, time_block)
    b_blk = batch_block if (batch_block >= 1 and B % batch_block == 0) else 1
    n_b, n_t = B // b_blk, T // t_blk

    out = pl.pallas_call(
        _crf_loss_kernel,
        out_shape=jax.ShapeDtypeStruct((n_b, 1, 1), jnp.float32),
        grid=(n_b, n_t),
        in_specs=[
            pl.BlockSpec((b_blk, t_blk, C), lambda b, t: (b, t, 0)),
            pl.BlockSpec((b_blk, t_blk, 2), lambda b, t: (b, t, 0)),
            pl.BlockSpec((1, C), lambda b, t: (0, 0)),
            pl.BlockSpec((1, C), lambda b, t: (0, 0)),
            pl.BlockSpec((C, C), lambda b, t: (0, 0)),
        ],
        out_specs=pl.BlockSpec((1, 1, 1), lambda b, t: (b, 0, 0)),
        scratch_shapes=[
            pltpu.VMEM((b_blk, C), jnp.float32),   # alpha (forward messages)
            pltpu.VMEM((b_blk, 1), jnp.float32),   # gold-score accumulator
            pltpu.VMEM((b_blk, C), jnp.float32),   # trans[prev raw label, :] carry
            pltpu.VMEM((b_blk, C), jnp.float32),   # one-hot of last valid tag
        ],
        compiler_params=pltpu.CompilerParams(
            dimension_semantics=("parallel", "arbitrary")),
    )(emis, meta, start, end, trans)
    # reduction='mean' over batch; per-batch-block sums are combined here so the
    # parallel batch grid axis (v7x megacore) stays correct.
    return -jnp.sum(out) / B


def crf_loss_ref(logits, labels, input_ids, start, end, trans, pad_token_id=0):
    """Pure-JAX reference replicating torchcrf forward (reduction='mean')."""
    B, T, C = logits.shape
    mask = (input_ids != pad_token_id).astype(jnp.float32)            # [B, T]
    ar = jnp.arange(B)
    # numerator
    score = start[labels[:, 0]] + logits[ar, 0, labels[:, 0]]
    for t in range(1, T):
        score = score + mask[:, t] * (trans[labels[:, t - 1], labels[:, t]]
                                      + logits[ar, t, labels[:, t]])
    seq_ends = mask.sum(1).astype(jnp.int32) - 1
    score = score + end[labels[ar, seq_ends]]
    # denominator
    alpha = start[None, :] + logits[:, 0, :]
    for t in range(1, T):
        sc = alpha[:, :, None] + trans[None, :, :] + logits[:, t, None, :]
        m = jnp.max(sc, axis=1)
        nxt = jnp.log(jnp.sum(jnp.exp(sc - m[:, None, :]), axis=1)) + m
        alpha = jnp.where(mask[:, t][:, None] > 0, nxt, alpha)
    alpha = alpha + end[None, :]
    m = jnp.max(alpha, axis=1)
    logz = jnp.log(jnp.sum(jnp.exp(alpha - m[:, None]), axis=1)) + m
    return -jnp.mean(score - logz)


if __name__ == "__main__":
    B, T, C = 2, 16, 8
    pad_token_id = 0

    key = jax.random.PRNGKey(0)
    k1, k2, k3, k4, k5 = jax.random.split(key, 5)

    logits = jax.random.normal(k1, (B, T, C), dtype=jnp.float32)
    labels = jax.random.randint(k2, (B, T), 0, C, dtype=jnp.int32)
    # contiguous valid prefixes; first token non-pad (torchcrf requires mask[:,0]==1)
    row0 = jnp.arange(5, 5 + T, dtype=jnp.int32)                        # fully valid
    row1 = jnp.where(jnp.arange(T) < 5, jnp.arange(5, 5 + T), 0).astype(jnp.int32)
    input_ids = jnp.stack([row0, row1], axis=0)

    # deterministic CRF parameter init (torchcrf uses uniform(-0.1, 0.1))
    start_transitions = jax.random.uniform(k3, (C,), minval=-0.1, maxval=0.1)
    end_transitions = jax.random.uniform(k4, (C,), minval=-0.1, maxval=0.1)
    transitions = jax.random.uniform(k5, (C, C), minval=-0.1, maxval=0.1)

    # time_block=8 -> grid (2, 2): parallel batch axis + streamed time blocks,
    # exercising the cross-block scratch carry.
    loss = crf_loss(logits, labels, input_ids, start_transitions,
                    end_transitions, transitions, pad_token_id,
                    time_block=8, batch_block=1)
    loss = jax.block_until_ready(loss)

    ref = crf_loss_ref(logits, labels, input_ids, start_transitions,
                       end_transitions, transitions, pad_token_id)
    assert jnp.allclose(loss, ref, rtol=1e-3, atol=1e-3), (loss, ref)
    print("KERNEL_OK")
</pallas_src>

<mosaic_0001>
module attributes {stable_mosaic.version = 11 : i64} {
  func.func @_crf_loss_kernel(%arg0: i32, %arg1: i32, %arg2: memref<1x8x8xf32, #tpu.memory_space<vmem>>, %arg3: memref<1x8x2xi32, #tpu.memory_space<vmem>>, %arg4: memref<1x8xf32, #tpu.memory_space<vmem>>, %arg5: memref<1x8xf32, #tpu.memory_space<vmem>>, %arg6: memref<8x8xf32, #tpu.memory_space<vmem>>, %arg7: memref<1x1x1xf32, #tpu.memory_space<vmem>>, %arg8: memref<1x8xf32, #tpu.memory_space<vmem>>, %arg9: memref<1x1xf32, #tpu.memory_space<vmem>>, %arg10: memref<1x8xf32, #tpu.memory_space<vmem>>, %arg11: memref<1x8xf32, #tpu.memory_space<vmem>>) attributes {dimension_semantics = [#tpu.dimension_semantics<parallel>, #tpu.dimension_semantics<arbitrary>], iteration_bounds = array<i64: 2, 2>, scalar_prefetch = 0 : i64, scratch_operands = 4 : i64, tpu.core_type = #tpu.core_type<tc>, window_params = [{transform_indices = @transform_0, window_bounds = array<i64: 1, 8, 8>}, {transform_indices = @transform_1, window_bounds = array<i64: 1, 8, 2>}, {pipeline_mode = #tpu.pipeline_mode<synchronous>, transform_indices = @transform_2, window_bounds = array<i64: 1, 8>}, {pipeline_mode = #tpu.pipeline_mode<synchronous>, transform_indices = @transform_3, window_bounds = array<i64: 1, 8>}, {pipeline_mode = #tpu.pipeline_mode<synchronous>, transform_indices = @transform_4, window_bounds = array<i64: 8, 8>}, {transform_indices = @transform_5, window_bounds = array<i64: 1, 1, 1>}]} {
    %c0_i32 = arith.constant 0 : i32
    %0 = arith.cmpi eq, %arg1, %c0_i32 : i32
    %c1_i32 = arith.constant 1 : i32
    %1 = arith.cmpi eq, %arg1, %c1_i32 : i32
    %c0 = arith.constant 0 : index
    %c0_0 = arith.constant 0 : index
    %2 = vector.load %arg4[%c0, %c0_0] : memref<1x8xf32, #tpu.memory_space<vmem>>, vector<1x8xf32>
    %c0_1 = arith.constant 0 : index
    %c0_2 = arith.constant 0 : index
    %3 = vector.load %arg5[%c0_1, %c0_2] : memref<1x8xf32, #tpu.memory_space<vmem>>, vector<1x8xf32>
    %c0_3 = arith.constant 0 : index
    %c0_4 = arith.constant 0 : index
    %4 = vector.load %arg6[%c0_3, %c0_4] : memref<8x8xf32, #tpu.memory_space<vmem>>, vector<8x8xf32>
    %c0_5 = arith.constant 0 : index
    %c0_6 = arith.constant 0 : index
    %c0_7 = arith.constant 0 : index
    %5 = vector.load %arg2[%c0_5, %c0_6, %c0_7] : memref<1x8x8xf32, #tpu.memory_space<vmem>>, vector<1x8x8xf32>
    %c0_8 = arith.constant 0 : index
    %c0_9 = arith.constant 0 : index
    %c0_10 = arith.constant 0 : index
    %6 = vector.load %arg3[%c0_8, %c0_9, %c0_10] : memref<1x8x2xi32, #tpu.memory_space<vmem>>, vector<1x8x2xi32>
    %7 = vector.extract_strided_slice %6 {offsets = [0, 0, 0], sizes = [1, 8, 1], strides = [1, 1, 1]} : vector<1x8x2xi32> to vector<1x8x1xi32>
    %8 = vector.extract_strided_slice %6 {offsets = [0, 0, 1], sizes = [1, 8, 1], strides = [1, 1, 1]} : vector<1x8x2xi32> to vector<1x8x1xi32>
    %9 = arith.sitofp %8 : vector<1x8x1xi32> to vector<1x8x1xf32>
    %10 = tpu.iota {dimensions = array<i32: 2>} : vector<1x8x8xi32>
    %11 = vector.broadcast %7 : vector<1x8x1xi32> to vector<1x8x8xi32>
    %12 = arith.cmpi eq, %11, %10 : vector<1x8x8xi32>
    %13 = arith.extui %12 : vector<1x8x8xi1> to vector<1x8x8xi32>
    %14 = arith.sitofp %13 : vector<1x8x8xi32> to vector<1x8x8xf32>
    %15 = arith.extui %0 : i1 to i32
    %c0_i32_11 = arith.constant 0 : i32
    %16 = arith.cmpi ne, %15, %c0_i32_11 : i32
    scf.if %16 {
      %cst_63 = arith.constant 0.000000e+00 : f32
      %252 = vector.broadcast %cst_63 : f32 to vector<1x8xf32>
      %c0_64 = arith.constant 0 : index
      %c0_65 = arith.constant 0 : index
      %253 = vector.load %arg8[%c0_64, %c0_65] : memref<1x8xf32, #tpu.memory_space<vmem>>, vector<1x8xf32>
      tpu.vector_store %arg8[%c0_64, %c0_65], %252 {strides = array<i32>} : memref<1x8xf32, #tpu.memory_space<vmem>>, vector<1x8xf32>,
      %cst_66 = arith.constant 0.000000e+00 : f32
      %254 = vector.broadcast %cst_66 : f32 to vector<1x1xf32>
      %c0_67 = arith.constant 0 : index
      %c0_68 = arith.constant 0 : index
      %255 = vector.load %arg9[%c0_67, %c0_68] : memref<1x1xf32, #tpu.memory_space<vmem>>, vector<1x1xf32>
      tpu.vector_store %arg9[%c0_67, %c0_68], %254 {strides = array<i32>} : memref<1x1xf32, #tpu.memory_space<vmem>>, vector<1x1xf32>,
      %cst_69 = arith.constant 0.000000e+00 : f32
      %256 = vector.broadcast %cst_69 : f32 to vector<1x8xf32>
      %c0_70 = arith.constant 0 : index
      %c0_71 = arith.constant 0 : index
      %257 = vector.load %arg11[%c0_70, %c0_71] : memref<1x8xf32, #tpu.memory_space<vmem>>, vector<1x8xf32>
      tpu.vector_store %arg11[%c0_70, %c0_71], %256 {strides = array<i32>} : memref<1x8xf32, #tpu.memory_space<vmem>>, vector<1x8xf32>,
      %c0_72 = arith.constant 0 : index
      %c0_73 = arith.constant 0 : index
      %258 = vector.load %arg10[%c0_72, %c0_73] : memref<1x8xf32, #tpu.memory_space<vmem>>, vector<1x8xf32>
      tpu.vector_store %arg10[%c0_72, %c0_73], %2 {strides = array<i32>} : memref<1x8xf32, #tpu.memory_space<vmem>>, vector<1x8xf32>,
    } else {
    }
    %17 = vector.shape_cast %14 : vector<1x8x8xf32> to vector<8x8xf32>
    %cst = arith.constant dense<0.000000e+00> : vector<8x8xf32>
    %18 = tpu.matmul %17, %4, %cst {dimension_numbers = #tpu.dot_dimension_numbers<[1], [0], [0], [1], [0, 0, 1, 1], [], []>} : vector<8x8xf32>, vector<8x8xf32>, vector<8x8xf32> -> vector<8x8xf32>
    %19 = vector.shape_cast %18 : vector<8x8xf32> to vector<1x8x8xf32>
    %20 = arith.mulf %5, %14 : vector<1x8x8xf32>
    %cst_12 = arith.constant dense<0.000000e+00> : vector<1x8xf32>
    %21 = vector.multi_reduction <add>, %20, %cst_12 [2] : vector<1x8x8xf32> to vector<1x8xf32>
    %22 = vector.shape_cast %21 : vector<1x8xf32> to vector<1x8x1xf32>
    %c0_13 = arith.constant 0 : index
    %c0_14 = arith.constant 0 : index
    %23 = vector.load %arg10[%c0_13, %c0_14] : memref<1x8xf32, #tpu.memory_space<vmem>>, vector<1x8xf32>
    %24 = vector.extract_strided_slice %14 {offsets = [0, 0, 0], sizes = [1, 1, 8], strides = [1, 1, 1]} : vector<1x8x8xf32> to vector<1x1x8xf32>
    %25 = vector.shape_cast %24 : vector<1x1x8xf32> to vector<1x8xf32>
    %26 = arith.mulf %23, %25 : vector<1x8xf32>
    %cst_15 = arith.constant dense<0.000000e+00> : vector<1xf32>
    %27 = vector.multi_reduction <add>, %26, %cst_15 [1] : vector<1x8xf32> to vector<1xf32>
    %28 = vector.shape_cast %27 : vector<1xf32> to vector<1x1xf32>
    %29 = vector.extract_strided_slice %9 {offsets = [0, 0, 0], sizes = [1, 1, 1], strides = [1, 1, 1]} : vector<1x8x1xf32> to vector<1x1x1xf32>
    %30 = vector.shape_cast %29 : vector<1x1x1xf32> to vector<1x1xf32>
    %cst_16 = arith.constant 1.000000e+00 : f32
    %31 = vector.broadcast %cst_16 : f32 to vector<1x1xf32>
    %32 = arith.select %0, %31, %30 : vector<1x1xf32>
    %33 = vector.extract_strided_slice %22 {offsets = [0, 0, 0], sizes = [1, 1, 1], strides = [1, 1, 1]} : vector<1x8x1xf32> to vector<1x1x1xf32>
    %34 = vector.shape_cast %33 : vector<1x1x1xf32> to vector<1x1xf32>
    %35 = arith.addf %34, %28 : vector<1x1xf32>
    %36 = arith.mulf %32, %35 : vector<1x1xf32>
    %37 = vector.extract_strided_slice %19 {offsets = [0, 0, 0], sizes = [1, 7, 8], strides = [1, 1, 1]} : vector<1x8x8xf32> to vector<1x7x8xf32>
    %38 = vector.extract_strided_slice %14 {offsets = [0, 1, 0], sizes = [1, 7, 8], strides = [1, 1, 1]} : vector<1x8x8xf32> to vector<1x7x8xf32>
    %39 = arith.mulf %37, %38 : vector<1x7x8xf32>
    %cst_17 = arith.constant dense<0.000000e+00> : vector<1x7xf32>
    %40 = vector.multi_reduction <add>, %39, %cst_17 [2] : vector<1x7x8xf32> to vector<1x7xf32>
    %41 = vector.shape_cast %40 : vector<1x7xf32> to vector<1x7x1xf32>
    %42 = vector.extract_strided_slice %9 {offsets = [0, 1, 0], sizes = [1, 7, 1], strides = [1, 1, 1]} : vector<1x8x1xf32> to vector<1x7x1xf32>
    %43 = vector.extract_strided_slice %22 {offsets = [0, 1, 0], sizes = [1, 7, 1], strides = [1, 1, 1]} : vector<1x8x1xf32> to vector<1x7x1xf32>
    %44 = arith.addf %43, %41 : vector<1x7x1xf32>
    %45 = arith.mulf %42, %44 : vector<1x7x1xf32>
    %cst_18 = arith.constant dense<0.000000e+00> : vector<1x1xf32>
    %46 = vector.multi_reduction <add>, %45, %cst_18 [1] : vector<1x7x1xf32> to vector<1x1xf32>
    %47 = arith.addf %36, %46 : vector<1x1xf32>
    %c0_19 = arith.constant 0 : index
    %c0_20 = arith.constant 0 : index
    %48 = vector.load %arg9[%c0_19, %c0_20] : memref<1x1xf32, #tpu.memory_space<vmem>>, vector<1x1xf32>
    %49 = arith.addf %48, %47 : vector<1x1xf32>
    %c0_21 = arith.constant 0 : index
    %c0_22 = arith.constant 0 : index
    %50 = vector.load %arg9[%c0_21, %c0_22] : memref<1x1xf32, #tpu.memory_space<vmem>>, vector<1x1xf32>
    tpu.vector_store %arg9[%c0_21, %c0_22], %49 {strides = array<i32>} : memref<1x1xf32, #tpu.memory_space<vmem>>, vector<1x1xf32>,
    %51 = vector.extract_strided_slice %19 {offsets = [0, 7, 0], sizes = [1, 1, 8], strides = [1, 1, 1]} : vector<1x8x8xf32> to vector<1x1x8xf32>
    %52 = vector.shape_cast %51 : vector<1x1x8xf32> to vector<1x8xf32>
    %c0_23 = arith.constant 0 : index
    %c0_24 = arith.constant 0 : index
    %53 = vector.load %arg10[%c0_23, %c0_24] : memref<1x8xf32, #tpu.memory_space<vmem>>, vector<1x8xf32>
    tpu.vector_store %arg10[%c0_23, %c0_24], %52 {strides = array<i32>} : memref<1x8xf32, #tpu.memory_space<vmem>>, vector<1x8xf32>,
    %54 = tpu.iota {dimensions = array<i32: 1>} : vector<1x8x1xi32>
    %c1_i32_25 = arith.constant 1 : i32
    %55 = vector.broadcast %c1_i32_25 : i32 to vector<1x8x1xi32>
    %56 = arith.addi %54, %55 : vector<1x8x1xi32>
    %57 = arith.muli %56, %8 : vector<1x8x1xi32>
    %cst_26 = arith.constant dense<-2147483648> : vector<1x1xi32>
    %58 = vector.multi_reduction <maxsi>, %57, %cst_26 [1] : vector<1x8x1xi32> to vector<1x1xi32>
    %59 = vector.shape_cast %58 : vector<1x1xi32> to vector<1x1x1xi32>
    %c1_i32_27 = arith.constant 1 : i32
    %60 = vector.broadcast %c1_i32_27 : i32 to vector<1x1x1xi32>
    %61 = arith.subi %59, %60 : vector<1x1x1xi32>
    %62 = vector.broadcast %61 : vector<1x1x1xi32> to vector<1x8x1xi32>
    %63 = arith.cmpi eq, %54, %62 : vector<1x8x1xi32>
    %64 = arith.extui %63 : vector<1x8x1xi1> to vector<1x8x1xi32>
    %65 = arith.sitofp %64 : vector<1x8x1xi32> to vector<1x8x1xf32>
    %66 = vector.broadcast %65 : vector<1x8x1xf32> to vector<1x8x8xf32>
    %67 = arith.mulf %66, %14 : vector<1x8x8xf32>
    %cst_28 = arith.constant dense<0.000000e+00> : vector<1x8xf32>
    %68 = vector.multi_reduction <add>, %67, %cst_28 [1] : vector<1x8x8xf32> to vector<1x8xf32>
    %69 = vector.shape_cast %59 : vector<1x1x1xi32> to vector<1x1xi32>
    %c0_i32_29 = arith.constant 0 : i32
    %70 = vector.broadcast %c0_i32_29 : i32 to vector<1x1xi32>
    %71 = arith.cmpi sgt, %69, %70 : vector<1x1xi32>
    %c0_30 = arith.constant 0 : index
    %c0_31 = arith.constant 0 : index
    %72 = vector.load %arg11[%c0_30, %c0_31] : memref<1x8xf32, #tpu.memory_space<vmem>>, vector<1x8xf32>
    %73 = vector.shape_cast %71 : vector<1x1xi1> to vector<1x1xi1>
    %74 = vector.broadcast %73 : vector<1x1xi1> to vector<1x8xi1>
    %75 = arith.select %74, %68, %72 : vector<1x8xi1>, vector<1x8xf32>
    %c0_32 = arith.constant 0 : index
    %c0_33 = arith.constant 0 : index
    %76 = vector.load %arg11[%c0_32, %c0_33] : memref<1x8xf32, #tpu.memory_space<vmem>>, vector<1x8xf32>
    tpu.vector_store %arg11[%c0_32, %c0_33], %75 {strides = array<i32>} : memref<1x8xf32, #tpu.memory_space<vmem>>, vector<1x8xf32>,
    %77 = vector.shape_cast %4 : vector<8x8xf32> to vector<1x8x8xf32>
    %c0_34 = arith.constant 0 : index
    %c0_35 = arith.constant 0 : index
    %78 = vector.load %arg8[%c0_34, %c0_35] : memref<1x8xf32, #tpu.memory_space<vmem>>, vector<1x8xf32>
    %79 = vector.extract_strided_slice %5 {offsets = [0, 0, 0], sizes = [1, 1, 8], strides = [1, 1, 1]} : vector<1x8x8xf32> to vector<1x1x8xf32>
    %80 = vector.shape_cast %79 : vector<1x1x8xf32> to vector<1x8xf32>
    %81 = vector.extract_strided_slice %9 {offsets = [0, 0, 0], sizes = [1, 1, 1], strides = [1, 1, 1]} : vector<1x8x1xf32> to vector<1x1x1xf32>
    %82 = vector.shape_cast %81 : vector<1x1x1xf32> to vector<1x1xf32>
    %83 = vector.shape_cast %78 : vector<1x8xf32> to vector<1x8x1xf32>
    %84 = vector.broadcast %83 : vector<1x8x1xf32> to vector<1x8x8xf32>
    %85 = arith.addf %84, %77 : vector<1x8x8xf32>
    %cst_36 = arith.constant dense<0xFF800000> : vector<1x8xf32>
    %86 = vector.multi_reduction <maximumf>, %85, %cst_36 [1] : vector<1x8x8xf32> to vector<1x8xf32>
    %87 = vector.shape_cast %86 : vector<1x8xf32> to vector<1x1x8xf32>
    %88 = vector.broadcast %87 : vector<1x1x8xf32> to vector<1x8x8xf32>
    %89 = arith.subf %85, %88 : vector<1x8x8xf32>
    %90 = math.exp %89 : vector<1x8x8xf32>
    %cst_37 = arith.constant dense<0.000000e+00> : vector<1x8xf32>
    %91 = vector.multi_reduction <add>, %90, %cst_37 [1] : vector<1x8x8xf32> to vector<1x8xf32>
    %92 = math.log %91 : vector<1x8xf32>
    %93 = arith.addf %92, %86 : vector<1x8xf32>
    %cst_38 = arith.constant 0.000000e+00 : f32
    %94 = vector.broadcast %cst_38 : f32 to vector<1x1xf32>
    %95 = arith.cmpf ogt, %82, %94 : vector<1x1xf32>
    %96 = arith.addf %93, %80 : vector<1x8xf32>
    %97 = vector.shape_cast %95 : vector<1x1xi1> to vector<1x1xi1>
    %98 = vector.broadcast %97 : vector<1x1xi1> to vector<1x8xi1>
    %99 = arith.select %98, %96, %78 : vector<1x8xi1>, vector<1x8xf32>
    %100 = arith.addf %2, %80 : vector<1x8xf32>
    %101 = arith.select %0, %100, %99 : vector<1x8xf32>
    %102 = vector.extract_strided_slice %5 {offsets = [0, 1, 0], sizes = [1, 1, 8], strides = [1, 1, 1]} : vector<1x8x8xf32> to vector<1x1x8xf32>
    %103 = vector.shape_cast %102 : vector<1x1x8xf32> to vector<1x8xf32>
    %104 = vector.extract_strided_slice %9 {offsets = [0, 1, 0], sizes = [1, 1, 1], strides = [1, 1, 1]} : vector<1x8x1xf32> to vector<1x1x1xf32>
    %105 = vector.shape_cast %104 : vector<1x1x1xf32> to vector<1x1xf32>
    %106 = vector.shape_cast %101 : vector<1x8xf32> to vector<1x8x1xf32>
    %107 = vector.broadcast %106 : vector<1x8x1xf32> to vector<1x8x8xf32>
    %108 = arith.addf %107, %77 : vector<1x8x8xf32>
    %cst_39 = arith.constant dense<0xFF800000> : vector<1x8xf32>
    %109 = vector.multi_reduction <maximumf>, %108, %cst_39 [1] : vector<1x8x8xf32> to vector<1x8xf32>
    %110 = vector.shape_cast %109 : vector<1x8xf32> to vector<1x1x8xf32>
    %111 = vector.broadcast %110 : vector<1x1x8xf32> to vector<1x8x8xf32>
    %112 = arith.subf %108, %111 : vector<1x8x8xf32>
    %113 = math.exp %112 : vector<1x8x8xf32>
    %cst_40 = arith.constant dense<0.000000e+00> : vector<1x8xf32>
    %114 = vector.multi_reduction <add>, %113, %cst_40 [1] : vector<1x8x8xf32> to vector<1x8xf32>
    %115 = math.log %114 : vector<1x8xf32>
    %116 = arith.addf %115, %109 : vector<1x8xf32>
    %cst_41 = arith.constant 0.000000e+00 : f32
    %117 = vector.broadcast %cst_41 : f32 to vector<1x1xf32>
    %118 = arith.cmpf ogt, %105, %117 : vector<1x1xf32>
    %119 = arith.addf %116, %103 : vector<1x8xf32>
    %120 = vector.shape_cast %118 : vector<1x1xi1> to vector<1x1xi1>
    %121 = vector.broadcast %120 : vector<1x1xi1> to vector<1x8xi1>
    %122 = arith.select %121, %119, %101 : vector<1x8xi1>, vector<1x8xf32>
    %123 = vector.extract_strided_slice %5 {offsets = [0, 2, 0], sizes = [1, 1, 8], strides = [1, 1, 1]} : vector<1x8x8xf32> to vector<1x1x8xf32>
    %124 = vector.shape_cast %123 : vector<1x1x8xf32> to vector<1x8xf32>
    %125 = vector.extract_strided_slice %9 {offsets = [0, 2, 0], sizes = [1, 1, 1], strides = [1, 1, 1]} : vector<1x8x1xf32> to vector<1x1x1xf32>
    %126 = vector.shape_cast %125 : vector<1x1x1xf32> to vector<1x1xf32>
    %127 = vector.shape_cast %122 : vector<1x8xf32> to vector<1x8x1xf32>
    %128 = vector.broadcast %127 : vector<1x8x1xf32> to vector<1x8x8xf32>
    %129 = arith.addf %128, %77 : vector<1x8x8xf32>
    %cst_42 = arith.constant dense<0xFF800000> : vector<1x8xf32>
    %130 = vector.multi_reduction <maximumf>, %129, %cst_42 [1] : vector<1x8x8xf32> to vector<1x8xf32>
    %131 = vector.shape_cast %130 : vector<1x8xf32> to vector<1x1x8xf32>
    %132 = vector.broadcast %131 : vector<1x1x8xf32> to vector<1x8x8xf32>
    %133 = arith.subf %129, %132 : vector<1x8x8xf32>
    %134 = math.exp %133 : vector<1x8x8xf32>
    %cst_43 = arith.constant dense<0.000000e+00> : vector<1x8xf32>
    %135 = vector.multi_reduction <add>, %134, %cst_43 [1] : vector<1x8x8xf32> to vector<1x8xf32>
    %136 = math.log %135 : vector<1x8xf32>
    %137 = arith.addf %136, %130 : vector<1x8xf32>
    %cst_44 = arith.constant 0.000000e+00 : f32
    %138 = vector.broadcast %cst_44 : f32 to vector<1x1xf32>
    %139 = arith.cmpf ogt, %126, %138 : vector<1x1xf32>
    %140 = arith.addf %137, %124 : vector<1x8xf32>
    %141 = vector.shape_cast %139 : vector<1x1xi1> to vector<1x1xi1>
    %142 = vector.broadcast %141 : vector<1x1xi1> to vector<1x8xi1>
    %143 = arith.select %142, %140, %122 : vector<1x8xi1>, vector<1x8xf32>
    %144 = vector.extract_strided_slice %5 {offsets = [0, 3, 0], sizes = [1, 1, 8], strides = [1, 1, 1]} : vector<1x8x8xf32> to vector<1x1x8xf32>
    %145 = vector.shape_cast %144 : vector<1x1x8xf32> to vector<1x8xf32>
    %146 = vector.extract_strided_slice %9 {offsets = [0, 3, 0], sizes = [1, 1, 1], strides = [1, 1, 1]} : vector<1x8x1xf32> to vector<1x1x1xf32>
    %147 = vector.shape_cast %146 : vector<1x1x1xf32> to vector<1x1xf32>
    %148 = vector.shape_cast %143 : vector<1x8xf32> to vector<1x8x1xf32>
    %149 = vector.broadcast %148 : vector<1x8x1xf32> to vector<1x8x8xf32>
    %150 = arith.addf %149, %77 : vector<1x8x8xf32>
    %cst_45 = arith.constant dense<0xFF800000> : vector<1x8xf32>
    %151 = vector.multi_reduction <maximumf>, %150, %cst_45 [1] : vector<1x8x8xf32> to vector<1x8xf32>
    %152 = vector.shape_cast %151 : vector<1x8xf32> to vector<1x1x8xf32>
    %153 = vector.broadcast %152 : vector<1x1x8xf32> to vector<1x8x8xf32>
    %154 = arith.subf %150, %153 : vector<1x8x8xf32>
    %155 = math.exp %154 : vector<1x8x8xf32>
    %cst_46 = arith.constant dense<0.000000e+00> : vector<1x8xf32>
    %156 = vector.multi_reduction <add>, %155, %cst_46 [1] : vector<1x8x8xf32> to vector<1x8xf32>
    %157 = math.log %156 : vector<1x8xf32>
    %158 = arith.addf %157, %151 : vector<1x8xf32>
    %cst_47 = arith.constant 0.000000e+00 : f32
    %159 = vector.broadcast %cst_47 : f32 to vector<1x1xf32>
    %160 = arith.cmpf ogt, %147, %159 : vector<1x1xf32>
    %161 = arith.addf %158, %145 : vector<1x8xf32>
    %162 = vector.shape_cast %160 : vector<1x1xi1> to vector<1x1xi1>
    %163 = vector.broadcast %162 : vector<1x1xi1> to vector<1x8xi1>
    %164 = arith.select %163, %161, %143 : vector<1x8xi1>, vector<1x8xf32>
    %165 = vector.extract_strided_slice %5 {offsets = [0, 4, 0], sizes = [1, 1, 8], strides = [1, 1, 1]} : vector<1x8x8xf32> to vector<1x1x8xf32>
    %166 = vector.shape_cast %165 : vector<1x1x8xf32> to vector<1x8xf32>
    %167 = vector.extract_strided_slice %9 {offsets = [0, 4, 0], sizes = [1, 1, 1], strides = [1, 1, 1]} : vector<1x8x1xf32> to vector<1x1x1xf32>
    %168 = vector.shape_cast %167 : vector<1x1x1xf32> to vector<1x1xf32>
    %169 = vector.shape_cast %164 : vector<1x8xf32> to vector<1x8x1xf32>
    %170 = vector.broadcast %169 : vector<1x8x1xf32> to vector<1x8x8xf32>
    %171 = arith.addf %170, %77 : vector<1x8x8xf32>
    %cst_48 = arith.constant dense<0xFF800000> : vector<1x8xf32>
    %172 = vector.multi_reduction <maximumf>, %171, %cst_48 [1] : vector<1x8x8xf32> to vector<1x8xf32>
    %173 = vector.shape_cast %172 : vector<1x8xf32> to vector<1x1x8xf32>
    %174 = vector.broadcast %173 : vector<1x1x8xf32> to vector<1x8x8xf32>
    %175 = arith.subf %171, %174 : vector<1x8x8xf32>
    %176 = math.exp %175 : vector<1x8x8xf32>
    %cst_49 = arith.constant dense<0.000000e+00> : vector<1x8xf32>
    %177 = vector.multi_reduction <add>, %176, %cst_49 [1] : vector<1x8x8xf32> to vector<1x8xf32>
    %178 = math.log %177 : vector<1x8xf32>
    %179 = arith.addf %178, %172 : vector<1x8xf32>
    %cst_50 = arith.constant 0.000000e+00 : f32
    %180 = vector.broadcast %cst_50 : f32 to vector<1x1xf32>
    %181 = arith.cmpf ogt, %168, %180 : vector<1x1xf32>
    %182 = arith.addf %179, %166 : vector<1x8xf32>
    %183 = vector.shape_cast %181 : vector<1x1xi1> to vector<1x1xi1>
    %184 = vector.broadcast %183 : vector<1x1xi1> to vector<1x8xi1>
    %185 = arith.select %184, %182, %164 : vector<1x8xi1>, vector<1x8xf32>
    %186 = vector.extract_strided_slice %5 {offsets = [0, 5, 0], sizes = [1, 1, 8], strides = [1, 1, 1]} : vector<1x8x8xf32> to vector<1x1x8xf32>
    %187 = vector.shape_cast %186 : vector<1x1x8xf32> to vector<1x8xf32>
    %188 = vector.extract_strided_slice %9 {offsets = [0, 5, 0], sizes = [1, 1, 1], strides = [1, 1, 1]} : vector<1x8x1xf32> to vector<1x1x1xf32>
    %189 = vector.shape_cast %188 : vector<1x1x1xf32> to vector<1x1xf32>
    %190 = vector.shape_cast %185 : vector<1x8xf32> to vector<1x8x1xf32>
    %191 = vector.broadcast %190 : vector<1x8x1xf32> to vector<1x8x8xf32>
    %192 = arith.addf %191, %77 : vector<1x8x8xf32>
    %cst_51 = arith.constant dense<0xFF800000> : vector<1x8xf32>
    %193 = vector.multi_reduction <maximumf>, %192, %cst_51 [1] : vector<1x8x8xf32> to vector<1x8xf32>
    %194 = vector.shape_cast %193 : vector<1x8xf32> to vector<1x1x8xf32>
    %195 = vector.broadcast %194 : vector<1x1x8xf32> to vector<1x8x8xf32>
    %196 = arith.subf %192, %195 : vector<1x8x8xf32>
    %197 = math.exp %196 : vector<1x8x8xf32>
    %cst_52 = arith.constant dense<0.000000e+00> : vector<1x8xf32>
    %198 = vector.multi_reduction <add>, %197, %cst_52 [1] : vector<1x8x8xf32> to vector<1x8xf32>
    %199 = math.log %198 : vector<1x8xf32>
    %200 = arith.addf %199, %193 : vector<1x8xf32>
    %cst_53 = arith.constant 0.000000e+00 : f32
    %201 = vector.broadcast %cst_53 : f32 to vector<1x1xf32>
    %202 = arith.cmpf ogt, %189, %201 : vector<1x1xf32>
    %203 = arith.addf %200, %187 : vector<1x8xf32>
    %204 = vector.shape_cast %202 : vector<1x1xi1> to vector<1x1xi1>
    %205 = vector.broadcast %204 : vector<1x1xi1> to vector<1x8xi1>
    %206 = arith.select %205, %203, %185 : vector<1x8xi1>, vector<1x8xf32>
    %207 = vector.extract_strided_slice %5 {offsets = [0, 6, 0], sizes = [1, 1, 8], strides = [1, 1, 1]} : vector<1x8x8xf32> to vector<1x1x8xf32>
    %208 = vector.shape_cast %207 : vector<1x1x8xf32> to vector<1x8xf32>
    %209 = vector.extract_strided_slice %9 {offsets = [0, 6, 0], sizes = [1, 1, 1], strides = [1, 1, 1]} : vector<1x8x1xf32> to vector<1x1x1xf32>
    %210 = vector.shape_cast %209 : vector<1x1x1xf32> to vector<1x1xf32>
    %211 = vector.shape_cast %206 : vector<1x8xf32> to vector<1x8x1xf32>
    %212 = vector.broadcast %211 : vector<1x8x1xf32> to vector<1x8x8xf32>
    %213 = arith.addf %212, %77 : vector<1x8x8xf32>
    %cst_54 = arith.constant dense<0xFF800000> : vector<1x8xf32>
    %214 = vector.multi_reduction <maximumf>, %213, %cst_54 [1] : vector<1x8x8xf32> to vector<1x8xf32>
    %215 = vector.shape_cast %214 : vector<1x8xf32> to vector<1x1x8xf32>
    %216 = vector.broadcast %215 : vector<1x1x8xf32> to vector<1x8x8xf32>
    %217 = arith.subf %213, %216 : vector<1x8x8xf32>
    %218 = math.exp %217 : vector<1x8x8xf32>
    %cst_55 = arith.constant dense<0.000000e+00> : vector<1x8xf32>
    %219 = vector.multi_reduction <add>, %218, %cst_55 [1] : vector<1x8x8xf32> to vector<1x8xf32>
    %220 = math.log %219 : vector<1x8xf32>
    %221 = arith.addf %220, %214 : vector<1x8xf32>
    %cst_56 = arith.constant 0.000000e+00 : f32
    %222 = vector.broadcast %cst_56 : f32 to vector<1x1xf32>
    %223 = arith.cmpf ogt, %210, %222 : vector<1x1xf32>
    %224 = arith.addf %221, %208 : vector<1x8xf32>
    %225 = vector.shape_cast %223 : vector<1x1xi1> to vector<1x1xi1>
    %226 = vector.broadcast %225 : vector<1x1xi1> to vector<1x8xi1>
    %227 = arith.select %226, %224, %206 : vector<1x8xi1>, vector<1x8xf32>
    %228 = vector.extract_strided_slice %5 {offsets = [0, 7, 0], sizes = [1, 1, 8], strides = [1, 1, 1]} : vector<1x8x8xf32> to vector<1x1x8xf32>
    %229 = vector.shape_cast %228 : vector<1x1x8xf32> to vector<1x8xf32>
    %230 = vector.extract_strided_slice %9 {offsets = [0, 7, 0], sizes = [1, 1, 1], strides = [1, 1, 1]} : vector<1x8x1xf32> to vector<1x1x1xf32>
    %231 = vector.shape_cast %230 : vector<1x1x1xf32> to vector<1x1xf32>
    %232 = vector.shape_cast %227 : vector<1x8xf32> to vector<1x8x1xf32>
    %233 = vector.broadcast %232 : vector<1x8x1xf32> to vector<1x8x8xf32>
    %234 = arith.addf %233, %77 : vector<1x8x8xf32>
    %cst_57 = arith.constant dense<0xFF800000> : vector<1x8xf32>
    %235 = vector.multi_reduction <maximumf>, %234, %cst_57 [1] : vector<1x8x8xf32> to vector<1x8xf32>
    %236 = vector.shape_cast %235 : vector<1x8xf32> to vector<1x1x8xf32>
    %237 = vector.broadcast %236 : vector<1x1x8xf32> to vector<1x8x8xf32>
    %238 = arith.subf %234, %237 : vector<1x8x8xf32>
    %239 = math.exp %238 : vector<1x8x8xf32>
    %cst_58 = arith.constant dense<0.000000e+00> : vector<1x8xf32>
    %240 = vector.multi_reduction <add>, %239, %cst_58 [1] : vector<1x8x8xf32> to vector<1x8xf32>
    %241 = math.log %240 : vector<1x8xf32>
    %242 = arith.addf %241, %235 : vector<1x8xf32>
    %cst_59 = arith.constant 0.000000e+00 : f32
    %243 = vector.broadcast %cst_59 : f32 to vector<1x1xf32>
    %244 = arith.cmpf ogt, %231, %243 : vector<1x1xf32>
    %245 = arith.addf %242, %229 : vector<1x8xf32>
    %246 = vector.shape_cast %244 : vector<1x1xi1> to vector<1x1xi1>
    %247 = vector.broadcast %246 : vector<1x1xi1> to vector<1x8xi1>
    %248 = arith.select %247, %245, %227 : vector<1x8xi1>, vector<1x8xf32>
    %c0_60 = arith.constant 0 : index
    %c0_61 = arith.constant 0 : index
    %249 = vector.load %arg8[%c0_60, %c0_61] : memref<1x8xf32, #tpu.memory_space<vmem>>, vector<1x8xf32>
    tpu.vector_store %arg8[%c0_60, %c0_61], %248 {strides = array<i32>} : memref<1x8xf32, #tpu.memory_space<vmem>>, vector<1x8xf32>,
    %250 = arith.extui %1 : i1 to i32
    %c0_i32_62 = arith.constant 0 : i32
    %251 = arith.cmpi ne, %250, %c0_i32_62 : i32
    scf.if %251 {
      %252 = arith.mulf %3, %75 : vector<1x8xf32>
      %cst_63 = arith.constant dense<0.000000e+00> : vector<1xf32>
      %253 = vector.multi_reduction <add>, %252, %cst_63 [1] : vector<1x8xf32> to vector<1xf32>
      %254 = vector.shape_cast %253 : vector<1xf32> to vector<1x1xf32>
      %255 = arith.addf %49, %254 : vector<1x1xf32>
      %256 = arith.addf %248, %3 : vector<1x8xf32>
      %cst_64 = arith.constant dense<0xFF800000> : vector<1xf32>
      %257 = vector.multi_reduction <maximumf>, %256, %cst_64 [1] : vector<1x8xf32> to vector<1xf32>
      %258 = vector.shape_cast %257 : vector<1xf32> to vector<1x1xf32>
      %259 = vector.broadcast %258 : vector<1x1xf32> to vector<1x8xf32>
      %260 = arith.subf %256, %259 : vector<1x8xf32>
      %261 = math.exp %260 : vector<1x8xf32>
      %cst_65 = arith.constant dense<0.000000e+00> : vector<1xf32>
      %262 = vector.multi_reduction <add>, %261, %cst_65 [1] : vector<1x8xf32> to vector<1xf32>
      %263 = vector.shape_cast %262 : vector<1xf32> to vector<1x1xf32>
      %264 = math.log %263 : vector<1x1xf32>
      %265 = arith.addf %264, %258 : vector<1x1xf32>
      %266 = arith.subf %255, %265 : vector<1x1xf32>
      %cst_66 = arith.constant dense<0.000000e+00> : vector<1xf32>
      %267 = vector.multi_reduction <add>, %266, %cst_66 [0] : vector<1x1xf32> to vector<1xf32>
      %268 = vector.shape_cast %267 : vector<1xf32> to vector<1x1xf32>
      %269 = vector.shape_cast %268 : vector<1x1xf32> to vector<1x1x1xf32>
      %c0_67 = arith.constant 0 : index
      %c0_68 = arith.constant 0 : index
      %c0_69 = arith.constant 0 : index
      %270 = vector.load %arg7[%c0_67, %c0_68, %c0_69] : memref<1x1x1xf32, #tpu.memory_space<vmem>>, vector<1x1x1xf32>
      tpu.vector_store %arg7[%c0_67, %c0_68, %c0_69], %269 {strides = array<i32>} : memref<1x1x1xf32, #tpu.memory_space<vmem>>, vector<1x1x1xf32>,
    } else {
    }
    return
  }
  func.func @transform_0(%arg0: i32, %arg1: i32) -> (i32, i32, i32) {
    %c0_i32 = arith.constant 0 : i32
    %c0_i32_0 = arith.constant 0 : i32
    return %arg0, %arg1, %c0_i32 : i32, i32, i32
  }
  func.func @transform_1(%arg0: i32, %arg1: i32) -> (i32, i32, i32) {
    %c0_i32 = arith.constant 0 : i32
    %c0_i32_0 = arith.constant 0 : i32
    return %arg0, %arg1, %c0_i32 : i32, i32, i32
  }
  func.func @transform_2(%arg0: i32, %arg1: i32) -> (i32, i32) {
    %c0_i32 = arith.constant 0 : i32
    %c0_i32_0 = arith.constant 0 : i32
    %c0_i32_1 = arith.constant 0 : i32
    return %c0_i32, %c0_i32_0 : i32, i32
  }
  func.func @transform_3(%arg0: i32, %arg1: i32) -> (i32, i32) {
    %c0_i32 = arith.constant 0 : i32
    %c0_i32_0 = arith.constant 0 : i32
    %c0_i32_1 = arith.constant 0 : i32
    return %c0_i32, %c0_i32_0 : i32, i32
  }
  func.func @transform_4(%arg0: i32, %arg1: i32) -> (i32, i32) {
    %c0_i32 = arith.constant 0 : i32
    %c0_i32_0 = arith.constant 0 : i32
    %c0_i32_1 = arith.constant 0 : i32
    return %c0_i32, %c0_i32_0 : i32, i32
  }
  func.func @transform_5(%arg0: i32, %arg1: i32) -> (i32, i32, i32) {
    %c0_i32 = arith.constant 0 : i32
    %c0_i32_0 = arith.constant 0 : i32
    %c0_i32_1 = arith.constant 0 : i32
    return %arg0, %c0_i32, %c0_i32_0 : i32, i32, i32
  }
}

</mosaic_0001>

<llo_original>
// kernel: tpu_custom_call.1
$region0: #{tpu_custom_call.1}
  #allocation0 [shape = 'u32[]', space=smem, size = 0x4, offset = 0x4, fixed_abs, tag = 'smem constant byte address 0x4 - core index']
  #allocation1 [shape = 'u32[72,128]{1,0:T(1,128)}', space=vmem, size = 0x9000, scoped, tag = 'internal scratch']
  #allocation2 [shape = 'f32[1,8]{1,0:T(1,128)}', space=vmem, size = 0x200, scoped, tag = 'scratch operand']
  #allocation3 [shape = 'f32[1,1]{1,0:T(1,128)}', space=vmem, size = 0x200, scoped, tag = 'scratch operand']
  #allocation4 [shape = 'f32[1,8]{1,0:T(1,128)}', space=vmem, size = 0x200, scoped, tag = 'scratch operand']
  #allocation5 [shape = 'f32[1,8]{1,0:T(1,128)}', space=vmem, size = 0x200, scoped, tag = 'scratch operand']
  %s0 = inlined_call_operand.vmem [shape: f32[2,16,8], index: 0, kind: input, shape index: {}]
  %s1 = inlined_call_operand.vmem [shape: s32[2,16,2], index: 1, kind: input, shape index: {}]
  %s2 = inlined_call_operand.vmem [shape: f32[1,8], index: 2, kind: input, shape index: {}]
  %s3 = inlined_call_operand.vmem [shape: f32[1,8], index: 3, kind: input, shape index: {}]
  %s4 = inlined_call_operand.vmem [shape: f32[8,8], index: 4, kind: input, shape index: {}]
  %s5 = inlined_call_operand.vmem [shape: f32[2,1,1], index: 5, kind: output, shape index: {}]
  %s6 = sld [smem:[#allocation0]]
  $region61: #{tpu_custom_call.1} parent=0
    _
  %s8 = ssub.s32 1, %s6
  %s9 = scalar_select 0, %s8, %s6
  loop: start=0, step=1, limit=6
  $region2: #{tpu_custom_call.1} parent=0 // loop_pre_header
    _
  $region3: #{tpu_custom_call.1} parent=0 // loop_header
    %s11 = sphi 0, %s15
    %p12 = scmp.ge.s32.totalorder %s11, 6
    %s18 = sphi 0, %s30
    %s19 = sphi 0, %s26
    %s20 = sphi 0, %s18
    %s21 = sphi 0, %s19
    %s22 = sphi 0, %s20
    %s23 = sphi 0, %s21
    %s35 = sphi 0, %s37
    %s38 = sphi 0, %s35
    %s39 = sphi 0, %s38
    %s55 = sphi 0, %s39
    %s63 = sphi 0, %s65
    %s66 = sphi 0, %s63
    %s67 = sphi 0, %s66
    %s83 = sphi 0, %s67
    %s87 = sphi 0, %s87
    %s89 = sphi 0, %s87
    %s90 = sphi 0, %s89
    %s104 = sphi 0, %s90
    %s108 = sphi 0, %s108
    %s110 = sphi 0, %s108
    %s111 = sphi 0, %s110
    %s125 = sphi 0, %s111
    %s129 = sphi 0, %s129
    %s131 = sphi 0, %s129
    %s132 = sphi 0, %s131
    %s146 = sphi 0, %s132
    %s152 = sphi 0, %s154
    %s155 = sphi 0, %s152
    %s156 = sphi 0, %s155
    %s172 = sphi 0, %s156
  $region4: #{tpu_custom_call.1} parent=0 // loop_header_branch
    %14 = sbr.rel (%p12) target = $region8
  $region5: #{tpu_custom_call.1} parent=0 // loop_body
    %s16 = ssub.s32 %s11, 1
    %s17 = ssub.s32 %s11, 2
    %s24 = sadd.s32 1, %s19
    %p25 = scmp.ge.s32.totalorder %s24, 2
    %s26 = scalar_select %p25, 0, %s24
    %s27 = sadd.s32 1, %s18
    %s28 = scalar_select %p25, %s27, %s18
    %p29 = scmp.ge.s32.totalorder %s28, 2
    %s30 = scalar_select %p29, 0, %s28
    %s31 = ssub.s32 %s18, %s30
    %s32 = ssub.s32 %s19, %s26
    %s33 = sor.u32 %s31, %s32
    %p34 = scmp.eq.s32.totalorder %s33, 0
    %s36 = sadd.s32 %s35, 1
    %s37 = scalar_select %p34, %s35, %s36
    %p40 = pneg %p34
    %p41 = scmp.eq.s32.totalorder %s11, 3
    %p42 = por %p40, %p41
    %p43 = scmp.ne.s32.totalorder %s35, %s38
    %p44 = scmp.eq.s32.totalorder %s11, 0
    %p45 = por %p43, %p44
    %p46 = scmp.ne.s32.totalorder %s35, %s38
    %p47 = scmp.eq.s32.totalorder %s16, 3
    %p48 = por %p46, %p47
    %p49 = scmp.ne.s32.totalorder %s38, %s39
    %p50 = scmp.eq.s32.totalorder %s16, 0
    %p51 = por %p49, %p50
    %p52 = scmp.ne.s32.totalorder %s38, %s39
    %p53 = scmp.eq.s32.totalorder %s17, 3
    %p54 = por %p52, %p53
    %p56 = scmp.ne.s32.totalorder %s39, %s55
    %p57 = scmp.eq.s32.totalorder %s17, 0
    %p58 = por %p56, %p57
    %s59 = ssub.s32 %s18, %s30
    %s60 = ssub.s32 %s19, %s26
    %s61 = sor.u32 %s59, %s60
    %p62 = scmp.eq.s32.totalorder %s61, 0
    %s64 = sadd.s32 %s63, 1
    %s65 = scalar_select %p62, %s63, %s64
    %p68 = pneg %p62
    %p69 = scmp.eq.s32.totalorder %s11, 3
    %p70 = por %p68, %p69
    %p71 = scmp.ne.s32.totalorder %s63, %s66
    %p72 = scmp.eq.s32.totalorder %s11, 0
    %p73 = por %p71, %p72
    %p74 = scmp.ne.s32.totalorder %s63, %s66
    %p75 = scmp.eq.s32.totalorder %s16, 3
    %p76 = por %p74, %p75
    %p77 = scmp.ne.s32.totalorder %s66, %s67
    %p78 = scmp.eq.s32.totalorder %s16, 0
    %p79 = por %p77, %p78
    %p80 = scmp.ne.s32.totalorder %s66, %s67
    %p81 = scmp.eq.s32.totalorder %s17, 3
    %p82 = por %p80, %p81
    %p84 = scmp.ne.s32.totalorder %s67, %s83
    %p85 = scmp.eq.s32.totalorder %s17, 0
    %p86 = por %p84, %p85
    %s88 = sadd.s32 %s87, 1
    %p91 = scmp.eq.s32.totalorder %s11, 3
    %p92 = scmp.ne.s32.totalorder %s87, %s89
    %p93 = scmp.eq.s32.totalorder %s11, 0
    %p94 = por %p92, %p93
    %p95 = scmp.ne.s32.totalorder %s87, %s89
    %p96 = scmp.eq.s32.totalorder %s16, 3
    %p97 = por %p95, %p96
    %p98 = scmp.ne.s32.totalorder %s89, %s90
    %p99 = scmp.eq.s32.totalorder %s16, 0
    %p100 = por %p98, %p99
    %p101 = scmp.ne.s32.totalorder %s89, %s90
    %p102 = scmp.eq.s32.totalorder %s17, 3
    %p103 = por %p101, %p102
    %p105 = scmp.ne.s32.totalorder %s90, %s104
    %p106 = scmp.eq.s32.totalorder %s17, 0
    %p107 = por %p105, %p106
    %s109 = sadd.s32 %s108, 1
    %p112 = scmp.eq.s32.totalorder %s11, 3
    %p113 = scmp.ne.s32.totalorder %s108, %s110
    %p114 = scmp.eq.s32.totalorder %s11, 0
    %p115 = por %p113, %p114
    %p116 = scmp.ne.s32.totalorder %s108, %s110
    %p117 = scmp.eq.s32.totalorder %s16, 3
    %p118 = por %p116, %p117
    %p119 = scmp.ne.s32.totalorder %s110, %s111
    %p120 = scmp.eq.s32.totalorder %s16, 0
    %p121 = por %p119, %p120
    %p122 = scmp.ne.s32.totalorder %s110, %s111
    %p123 = scmp.eq.s32.totalorder %s17, 3
    %p124 = por %p122, %p123
    %p126 = scmp.ne.s32.totalorder %s111, %s125
    %p127 = scmp.eq.s32.totalorder %s17, 0
    %p128 = por %p126, %p127
    %s130 = sadd.s32 %s129, 1
    %p133 = scmp.eq.s32.totalorder %s11, 3
    %p134 = scmp.ne.s32.totalorder %s129, %s131
    %p135 = scmp.eq.s32.totalorder %s11, 0
    %p136 = por %p134, %p135
    %p137 = scmp.ne.s32.totalorder %s129, %s131
    %p138 = scmp.eq.s32.totalorder %s16, 3
    %p139 = por %p137, %p138
    %p140 = scmp.ne.s32.totalorder %s131, %s132
    %p141 = scmp.eq.s32.totalorder %s16, 0
    %p142 = por %p140, %p141
    %p143 = scmp.ne.s32.totalorder %s131, %s132
    %p144 = scmp.eq.s32.totalorder %s17, 3
    %p145 = por %p143, %p144
    %p147 = scmp.ne.s32.totalorder %s132, %s146
    %p148 = scmp.eq.s32.totalorder %s17, 0
    %p149 = por %p147, %p148
    %s150 = ssub.s32 %s18, %s30
    %p151 = scmp.eq.s32.totalorder %s150, 0
    %s153 = sadd.s32 %s152, 1
    %s154 = scalar_select %p151, %s152, %s153
    %p157 = pneg %p151
    %p158 = scmp.eq.s32.totalorder %s11, 3
    %p159 = por %p157, %p158
    %p160 = scmp.ne.s32.totalorder %s152, %s155
    %p161 = scmp.eq.s32.totalorder %s11, 0
    %p162 = por %p160, %p161
    %p163 = scmp.ne.s32.totalorder %s152, %s155
    %p164 = scmp.eq.s32.totalorder %s16, 3
    %p165 = por %p163, %p164
    %p166 = scmp.ne.s32.totalorder %s155, %s156
    %p167 = scmp.eq.s32.totalorder %s16, 0
    %p168 = por %p166, %p167
    %p169 = scmp.ne.s32.totalorder %s155, %s156
    %p170 = scmp.eq.s32.totalorder %s17, 3
    %p171 = por %p169, %p170
    %p173 = scmp.ne.s32.totalorder %s156, %s172
    %p174 = scmp.eq.s32.totalorder %s17, 0
    %p175 = por %p173, %p174
    %p176 = scmp.le.s32.totalorder 1, %s11
    %p177 = scmp.lt.s32.totalorder %s11, 5
    %p178 = pnand %p176, %p177
    %p179 = pneg %p178
    // Predicated region
    $region9: #{tpu_custom_call.1} parent=5 // pred_check
      _
    $region10: #{tpu_custom_call.1} parent=5 // pred_check_branch
      %181 = sbr.rel (%p178) target = $region12
    $region11: #{tpu_custom_call.1} parent=5 // pred_region
      %s182 = ssub.s32 %s11, 1
      // Predicated region
      $region13: #{tpu_custom_call.1} parent=11 // pred_check
        %p183 = pneg %p100
      $region14: #{tpu_custom_call.1} parent=11 // pred_check_branch
        %185 = sbr.rel (%p183) target = $region16
      $region15: #{tpu_custom_call.1} parent=11 // pred_region
        _
      $region16: #{tpu_custom_call.1} parent=11 // pred_fallthru
        _
      // Predicated region
      $region17: #{tpu_custom_call.1} parent=11 // pred_check
        %p186 = pneg %p121
      $region18: #{tpu_custom_call.1} parent=11 // pred_check_branch
        %188 = sbr.rel (%p186) target = $region20
      $region19: #{tpu_custom_call.1} parent=11 // pred_region
        _
      $region20: #{tpu_custom_call.1} parent=11 // pred_fallthru
        _
      // Predicated region
      $region21: #{tpu_custom_call.1} parent=11 // pred_check
        %p189 = pneg %p142
      $region22: #{tpu_custom_call.1} parent=11 // pred_check_branch
        %191 = sbr.rel (%p189) target = $region24
      $region23: #{tpu_custom_call.1} parent=11 // pred_region
        _
      $region24: #{tpu_custom_call.1} parent=11 // pred_fallthru
        _
    $region12: #{tpu_custom_call.1} parent=5 // pred_fallthru
      _
    %p192 = scmp.lt.s32.totalorder %s11, 4
    // Predicated region
    $region25: #{tpu_custom_call.1} parent=5 // pred_check
      %p193 = pneg %p192
    $region26: #{tpu_custom_call.1} parent=5 // pred_check_branch
      %195 = sbr.rel (%p193) target = $region28
    $region27: #{tpu_custom_call.1} parent=5 // pred_region
      // Predicated region
      $region29: #{tpu_custom_call.1} parent=27 // pred_check
        %p196 = pneg %p45
      $region30: #{tpu_custom_call.1} parent=27 // pred_check_branch
        %198 = sbr.rel (%p196) target = $region32
      $region31: #{tpu_custom_call.1} parent=27 // pred_region
        %p199 = scmp.lt.s32.totalorder %s18, 1
        %s200 = scalar_select %p199, %s18, 1
        %p201 = scmp.lt.s32.totalorder %s19, 1
        %s202 = scalar_select %p201, %s19, 1
        %s203 = smul.addr %s200, 2
        %s204 = sadd.s32 %s202, %s203
        %s205 = smul.addr %s204, 8
        %s206 = scalar_lea.vmem %s0, %s205
      $region32: #{tpu_custom_call.1} parent=27 // pred_fallthru
        _
      // Predicated region
      $region33: #{tpu_custom_call.1} parent=27 // pred_check
        %p207 = pneg %p73
      $region34: #{tpu_custom_call.1} parent=27 // pred_check_branch
        %209 = sbr.rel (%p207) target = $region36
      $region35: #{tpu_custom_call.1} parent=27 // pred_region
        %p210 = scmp.lt.s32.totalorder %s18, 1
        %s211 = scalar_select %p210, %s18, 1
        %p212 = scmp.lt.s32.totalorder %s19, 1
        %s213 = scalar_select %p212, %s19, 1
        %s214 = smul.addr %s211, 2
        %s215 = sadd.s32 %s213, %s214
        %s216 = smul.addr %s215, 8
        %s217 = scalar_lea.vmem %s1, %s216
      $region36: #{tpu_custom_call.1} parent=27 // pred_fallthru
        _
    $region28: #{tpu_custom_call.1} parent=5 // pred_fallthru
      _
    %p218 = scmp.le.s32.totalorder 1, %s11
    %p219 = scmp.lt.s32.totalorder %s11, 5
    %p220 = pnand %p218, %p219
    %p221 = pneg %p220
    // Predicated region
    $region37: #{tpu_custom_call.1} parent=5 // pred_check
      _
    $region38: #{tpu_custom_call.1} parent=5 // pred_check_branch
      %223 = sbr.rel (%p220) target = $region40
    $region39: #{tpu_custom_call.1} parent=5 // pred_region
      %s224 = ssub.s32 %s11, 1
      %p225 = scmp.lt.s32.totalorder %s20, 1
      %s226 = scalar_select %p225, %s20, 1
      %p227 = scmp.lt.s32.totalorder %s21, 1
      %s228 = scalar_select %p227, %s21, 1
      %s229 = smul.addr %s226, 2
      %s230 = sadd.s32 %s228, %s229
      %s231 = smul.addr %s230, 8
      %s232 = scalar_lea.vmem %s0, %s231
      %p233 = pneg %p51
      %p234 = pneg %p48
      %p235 = scmp.lt.s32.totalorder %s20, 1
      %s236 = scalar_select %p235, %s20, 1
      %p237 = scmp.lt.s32.totalorder %s21, 1
      %s238 = scalar_select %p237, %s21, 1
      %s239 = smul.addr %s236, 2
      %s240 = sadd.s32 %s238, %s239
      %s241 = smul.addr %s240, 8
      %s242 = scalar_lea.vmem %s1, %s241
      %p243 = pneg %p79
      %p244 = pneg %p76
      %p245 = pneg %p100
      %p246 = pneg %p97
      %p247 = pneg %p121
      %p248 = pneg %p118
      %p249 = pneg %p142
      %p250 = pneg %p139
      %p251 = pneg %p168
      %p252 = pneg %p165
      %p253 = scmp.lt.s32.totalorder %s20, 1
      %s254 = scalar_select %p253, %s20, 1
      %s255 = scalar_lea.vmem %s5, %s254
      %p256 = scmp.lt.s32.totalorder %s20, 1
      %s257 = scalar_select %p256, %s20, 1
      %p258 = scmp.lt.s32.totalorder %s21, 1
      %s259 = scalar_select %p258, %s21, 1
      %s260 = smul.addr %s257, 2
      %s261 = sadd.s32 %s259, %s260
      %s262 = smul.addr %s261, 8
      %s263 = scalar_lea.vmem %s0, %s262
      %p264 = scmp.lt.s32.totalorder %s20, 1
      %s265 = scalar_select %p264, %s20, 1
      %p266 = scmp.lt.s32.totalorder %s21, 1
      %s267 = scalar_select %p266, %s21, 1
      %s268 = smul.addr %s265, 2
      %s269 = sadd.s32 %s267, %s268
      %s270 = smul.addr %s269, 8
      %s271 = scalar_lea.vmem %s1, %s270
      %p272 = scmp.lt.s32.totalorder %s20, 1
      %s273 = scalar_select %p272, %s20, 1
      %s274 = scalar_lea.vmem %s5, %s273
      %p275 = scmp.eq.s32.totalorder %s21, 0
      %p276 = scmp.eq.s32.totalorder %s21, 1
      %v277 = vld [vmem:[%s2] sm:$0x1]
      %v278 = vld [vmem:[%s3] sm:$0x1]
      %v279 = vld [vmem:[%s4] sm:$0xff]
      %v280 = vld [vmem:[%s263] sm:$0xff]
      %v281 = vld [vmem:[%s271] sm:$0xff]
      %v282 = vcvt.s32.f32 %v281
      %v283 = vlaneseq
      %v284 = vand.u32 %v283, 127
      %285 = vset.pattern.permute.xlu0 0
      %286 = vperm.xlu0 %285, %v281
      %v287 = vpop.permute.xlu0 %286
      %vm288 = vcmp.eq.s32.totalorder %v287, %v284
      %v289 = vsel %vm288, 1, 0
      %v290 = vcvt.s32.f32 %v289
      // Predicated region
      $region41: #{tpu_custom_call.1} parent=39 // pred_check
        %p291 = pneg %p275
      $region42: #{tpu_custom_call.1} parent=39 // pred_check_branch
        %293 = sbr.rel (%p291) target = $region44
      $region43: #{tpu_custom_call.1} parent=39 // pred_region
        %vm294 = vcmask 57344
        %295 = vst.msk [vmem:[#allocation2] sm:$0x1] %vm294, 0.0
        %vm296 = vcmask 0
        %297 = vst.msk [vmem:[#allocation3] sm:$0x1] %vm296, 0.0
        %298 = vst.msk [vmem:[#allocation5] sm:$0x1] %vm294, 0.0
        %299 = vst.msk [vmem:[#allocation4] sm:$0x1] %vm294, %v277
      $region44: #{tpu_custom_call.1} parent=39 // pred_fallthru
        _
      %vm300 = vcmask 64512
      %v302 = vsel %vm300, %v290, 0
      %304 = vmatpush.msra.mxu0 0.0
      %305 = vmatpush.msra.mxu0 0.0
      %306 = vmatpush.msra.mxu0 0.0
      %307 = vmatpush.msra.mxu0 0.0
      %308 = vmatpush.msra.mxu0 0.0
      %309 = vmatpush.msra.mxu0 0.0
      %310 = vmatpush.msra.mxu0 0.0
      %311 = vmatpush.msra.mxu0 0.0
      %312 = vmatpush.msra.mxu0 0.0
      %313 = vmatpush.msra.mxu0 0.0
      %314 = vmatpush.msra.mxu0 0.0
      %315 = vmatpush.msra.mxu0 0.0
      %316 = vmatpush.msra.mxu0 0.0
      %317 = vmatpush.msra.mxu0 0.0
      %318 = vmatpush.msra.mxu0 0.0
      %319 = vmatpush.msra.mxu0 %v279
      %320 = vmatmul.f32.gmra.mxu0 %v302
      %v321 = vpop.f32.mrf.mxu0
      %v322 = vadd.f32 0.0, %v321
      %323 = vdwg.mxu0
      %v324 = vmul.f32 %v280, %v290
      %v325 = vsel %vm300, %v324, 0.0
      %326 = vadd.xlane.f32.xlu0 %v325
      %v327 = vpop.xlane.xlu0 %326
      %v328 = vld [vmem:[#allocation4] sm:$0x1]
      %v329 = vmul.f32 %v328, %v290
      %vm330 = vcmask 57344
      %v331 = vsel %vm330, %v329, 0.0
      %332 = vadd.xlane.f32.xlu0 %v331
      %v333 = vpop.xlane.xlu0 %332
      %s334 = scalar_select %p275, 1, 0
      %v335 = vstv %s334
      %vm336 = vcmp.eq.s32.totalorder %v335, 1
      %v337 = vsel %vm336, 1.0, %v282
      %v338 = vadd.f32 %v327, %v333
      %v339 = vmul.f32 %v337, %v338
      %v340 = vrot.slane %v290, 1
      %v342 = vmul.f32 %v322, %v340
      %vm343 = vcmask 63488
      %v344 = vsel %vm343, %v342, 0.0
      %345 = vadd.xlane.f32.xlu0 %v344
      %v346 = vpop.xlane.xlu0 %345
      %v348 = vrot.slane %v346, 7
      %v350 = vadd.f32 %v327, %v348
      %352 = vrot.lane.b32.xlu0 %v350, 1
      %v353 = vpop.permute.xlu0 %352
      %v355 = vmul.f32 %v282, %v353
      %v357 = vrot.slane %v355, 1
      %vm359 = vcmask 14344
      %v360 = vsel %vm359, %v357, 0.0
      %v361 = vrot.slane %v360, 4
      %v362 = vadd.f32 %v360, %v361
      %v363 = vrot.slane %v362, 2
      %v364 = vadd.f32 %v362, %v363
      %v365 = vrot.slane %v364, 1
      %v366 = vadd.f32 %v364, %v365
      %v367 = vadd.f32 %v339, %v366
      %v368 = vld [vmem:[#allocation3] sm:$0x1]
      %370 = vrot.lane.b32.xlu0 %v367, 127
      %v371 = vpop.permute.xlu0 %370
      %v373 = vadd.f32 %v368, %v371
      %vm374 = vcmask 0
      %375 = vst.msk [vmem:[#allocation3] sm:$0x1] %vm374, %v373
      %vm376 = vcmask 64519
      %377 = vst.msk [vmem:[#allocation4 - $0x7] sm:$0x80] %vm376, %v322
      %v378 = vlaneseq
      %v379 = vshrl.u32 %v378, 7
      %v380 = vadd.s32 %v379, 1
      %v381 = vmul.u32 %v380, %v281
      %vm382 = vcmask 15368
      %v383 = vsel %vm382, %v381, 2147483648
      %v384 = vrot.slane %v383, 4
      %vm385 = vcmp.gt.s32.totalorder %v383, %v384
      %v386 = vsel %vm385, %v383, %v384
      %v387 = vrot.slane %v386, 2
      %vm388 = vcmp.gt.s32.totalorder %v386, %v387
      %v389 = vsel %vm388, %v386, %v387
      %v390 = vrot.slane %v389, 1
      %vm391 = vcmp.gt.s32.totalorder %v389, %v390
      %v392 = vsel %vm391, %v389, %v390
      %v393 = vsub.s32 %v392, 1
      %vm394 = vcmp.eq.s32.totalorder %v379, %v393
      %v395 = vsel %vm394, 1, 0
      %v396 = vcvt.s32.f32 %v395
      %398 = vset.pattern.permute.xlu0 1
      %399 = vperm.xlu0 %398, %v396
      %v400 = vpop.permute.xlu0 %399
      %v402 = vmul.f32 %v400, %v290
      %v403 = vsel %vm300, %v402, 0.0
      %v404 = vrot.slane %v403, 4
      %v405 = vadd.f32 %v403, %v404
      %v406 = vrot.slane %v405, 2
      %v407 = vadd.f32 %v405, %v406
      %v408 = vrot.slane %v407, 1
      %v409 = vadd.f32 %v407, %v408
      %vm410 = vcmp.gt.s32.totalorder %v392, 0
      %v411 = vld [vmem:[#allocation5] sm:$0x1]
      %v412 = vsel %vm410, 1, 0
      %413 = vset.pattern.permute.xlu0 1
      %414 = vperm.xlu0 %413, %v412
      %v415 = vpop.permute.xlu0 %414
      %vm416 = vcmp.eq.s32.totalorder %v415, 1
      %v417 = vsel %vm416, %v409, %v411
      %418 = vst.msk [vmem:[#allocation5] sm:$0x1] %vm330, %v417
      %v419 = vld [vmem:[#allocation2] sm:$0x1]
      %v420 = vperm.slane %v419, 0
      %v421 = vlaneseq
      %v422 = vshrl.u32 %v421, 7
      %424 = vset.pattern.permute.xlu0 %v422
      %425 = vperm.xlu0 %424, %v420
      %v426 = vpop.permute.xlu0 %425
      %v427 = vadd.f32 %v426, %v279
      %v428 = vsel %vm300, %v427, -inf
      %v429 = vrot.slane %v428, 4
      %v430 = vmax.f32 %v428, %v429
      %v431 = vrot.slane %v430, 2
      %v432 = vmax.f32 %v430, %v431
      %v433 = vrot.slane %v432, 1
      %v434 = vmax.f32 %v432, %v433
      %v435 = vsub.f32 %v427, %v434
      %v436 = vmul.f32 %v435, 1.442695
      %v437 = vpow.pop %v436
      %v438 = vsel %vm300, %v437, 0.0
      %v439 = vrot.slane %v438, 4
      %v440 = vadd.f32 %v438, %v439
      %v441 = vrot.slane %v440, 2
      %v442 = vadd.f32 %v440, %v441
      %v443 = vrot.slane %v442, 1
      %v444 = vadd.f32 %v442, %v443
      %v445 = vlog2.pop %v444
      %v446 = vmul.f32 %v445, 0.6931472
      %v447 = vadd.f32 %v446, %v434
      %vm448 = vcmp.gt.f32.partialorder %v282, 0.0
      %v449 = vadd.f32 %v447, %v280
      %v450 = vsel %vm448, 1, 0
      %451 = vset.pattern.permute.xlu0 1
      %452 = vperm.xlu0 %451, %v450
      %v453 = vpop.permute.xlu0 %452
      %vm454 = vcmp.eq.s32.totalorder %v453, 1
      %v455 = vsel %vm454, %v449, %v419
      %v456 = vadd.f32 %v277, %v280
      %v457 = vsel %vm336, %v456, %v455
      %v458 = vperm.slane %v457, 0
      %v459 = vlaneseq
      %v460 = vshrl.u32 %v459, 7
      %462 = vset.pattern.permute.xlu0 %v460
      %463 = vperm.xlu0 %462, %v458
      %v464 = vpop.permute.xlu0 %463
      %v465 = vadd.f32 %v464, %v279
      %v466 = vsel %vm300, %v465, -inf
      %v467 = vrot.slane %v466, 4
      %v468 = vmax.f32 %v466, %v467
      %v469 = vrot.slane %v468, 2
      %v470 = vmax.f32 %v468, %v469
      %v471 = vrot.slane %v470, 1
      %v472 = vmax.f32 %v470, %v471
      %v473 = vsub.f32 %v465, %v472
      %v474 = vmul.f32 %v473, 1.442695
      %v475 = vpow.pop %v474
      %v476 = vsel %vm300, %v475, 0.0
      %v477 = vrot.slane %v476, 4
      %v478 = vadd.f32 %v476, %v477
      %v479 = vrot.slane %v478, 2
      %v480 = vadd.f32 %v478, %v479
      %v481 = vrot.slane %v480, 1
      %v482 = vadd.f32 %v480, %v481
      %v483 = vlog2.pop %v482
      %v484 = vmul.f32 %v483, 0.6931472
      %v485 = vadd.f32 %v484, %v472
      %v486 = vadd.f32 %v485, %v280
      %v488 = vperm.slane %v457, 0
      %v490 = vsel %vm454, %v486, %v488
      %v491 = vperm.slane %v490, 1
      %v492 = vlaneseq
      %v493 = vshrl.u32 %v492, 7
      %495 = vset.pattern.permute.xlu0 %v493
      %496 = vperm.xlu0 %495, %v491
      %v497 = vpop.permute.xlu0 %496
      %v498 = vadd.f32 %v497, %v279
      %v499 = vsel %vm300, %v498, -inf
      %v500 = vrot.slane %v499, 4
      %v501 = vmax.f32 %v499, %v500
      %v502 = vrot.slane %v501, 2
      %v503 = vmax.f32 %v501, %v502
      %v504 = vrot.slane %v503, 1
      %v505 = vmax.f32 %v503, %v504
      %v506 = vsub.f32 %v498, %v505
      %v507 = vmul.f32 %v506, 1.442695
      %v508 = vpow.pop %v507
      %v509 = vsel %vm300, %v508, 0.0
      %v510 = vrot.slane %v509, 4
      %v511 = vadd.f32 %v509, %v510
      %v512 = vrot.slane %v511, 2
      %v513 = vadd.f32 %v511, %v512
      %v514 = vrot.slane %v513, 1
      %v515 = vadd.f32 %v513, %v514
      %v516 = vlog2.pop %v515
      %v517 = vmul.f32 %v516, 0.6931472
      %v518 = vadd.f32 %v517, %v505
      %v519 = vadd.f32 %v518, %v280
      %v521 = vrot.slane %v490, 7
      %v523 = vsel %vm454, %v519, %v521
      %v524 = vperm.slane %v523, 2
      %v525 = vlaneseq
      %v526 = vshrl.u32 %v525, 7
      %528 = vset.pattern.permute.xlu0 %v526
      %529 = vperm.xlu0 %528, %v524
      %v530 = vpop.permute.xlu0 %529
      %v531 = vadd.f32 %v530, %v279
      %v532 = vsel %vm300, %v531, -inf
      %v533 = vrot.slane %v532, 4
      %v534 = vmax.f32 %v532, %v533
      %v535 = vrot.slane %v534, 2
      %v536 = vmax.f32 %v534, %v535
      %v537 = vrot.slane %v536, 1
      %v538 = vmax.f32 %v536, %v537
      %v539 = vsub.f32 %v531, %v538
      %v540 = vmul.f32 %v539, 1.442695
      %v541 = vpow.pop %v540
      %v542 = vsel %vm300, %v541, 0.0
      %v543 = vrot.slane %v542, 4
      %v544 = vadd.f32 %v542, %v543
      %v545 = vrot.slane %v544, 2
      %v546 = vadd.f32 %v544, %v545
      %v547 = vrot.slane %v546, 1
      %v548 = vadd.f32 %v546, %v547
      %v549 = vlog2.pop %v548
      %v550 = vmul.f32 %v549, 0.6931472
      %v551 = vadd.f32 %v550, %v538
      %v552 = vadd.f32 %v551, %v280
      %v554 = vrot.slane %v523, 7
      %v556 = vsel %vm454, %v552, %v554
      %v557 = vperm.slane %v556, 3
      %v558 = vlaneseq
      %v559 = vshrl.u32 %v558, 7
      %561 = vset.pattern.permute.xlu0 %v559
      %562 = vperm.xlu0 %561, %v557
      %v563 = vpop.permute.xlu0 %562
      %v564 = vadd.f32 %v563, %v279
      %v565 = vsel %vm300, %v564, -inf
      %v566 = vrot.slane %v565, 4
      %v567 = vmax.f32 %v565, %v566
      %v568 = vrot.slane %v567, 2
      %v569 = vmax.f32 %v567, %v568
      %v570 = vrot.slane %v569, 1
      %v571 = vmax.f32 %v569, %v570
      %v572 = vsub.f32 %v564, %v571
      %v573 = vmul.f32 %v572, 1.442695
      %v574 = vpow.pop %v573
      %v575 = vsel %vm300, %v574, 0.0
      %v576 = vrot.slane %v575, 4
      %v577 = vadd.f32 %v575, %v576
      %v578 = vrot.slane %v577, 2
      %v579 = vadd.f32 %v577, %v578
      %v580 = vrot.slane %v579, 1
      %v581 = vadd.f32 %v579, %v580
      %v582 = vlog2.pop %v581
      %v583 = vmul.f32 %v582, 0.6931472
      %v584 = vadd.f32 %v583, %v571
      %v585 = vadd.f32 %v584, %v280
      %v587 = vrot.slane %v556, 7
      %v589 = vsel %vm454, %v585, %v587
      %v590 = vperm.slane %v589, 4
      %v591 = vlaneseq
      %v592 = vshrl.u32 %v591, 7
      %594 = vset.pattern.permute.xlu0 %v592
      %595 = vperm.xlu0 %594, %v590
      %v596 = vpop.permute.xlu0 %595
      %v597 = vadd.f32 %v596, %v279
      %v598 = vsel %vm300, %v597, -inf
      %v599 = vrot.slane %v598, 4
      %v600 = vmax.f32 %v598, %v599
      %v601 = vrot.slane %v600, 2
      %v602 = vmax.f32 %v600, %v601
      %v603 = vrot.slane %v602, 1
      %v604 = vmax.f32 %v602, %v603
      %v605 = vsub.f32 %v597, %v604
      %v606 = vmul.f32 %v605, 1.442695
      %v607 = vpow.pop %v606
      %v608 = vsel %vm300, %v607, 0.0
      %v609 = vrot.slane %v608, 4
      %v610 = vadd.f32 %v608, %v609
      %v611 = vrot.slane %v610, 2
      %v612 = vadd.f32 %v610, %v611
      %v613 = vrot.slane %v612, 1
      %v614 = vadd.f32 %v612, %v613
      %v615 = vlog2.pop %v614
      %v616 = vmul.f32 %v615, 0.6931472
      %v617 = vadd.f32 %v616, %v604
      %v618 = vadd.f32 %v617, %v280
      %v620 = vrot.slane %v589, 7
      %v622 = vsel %vm454, %v618, %v620
      %v623 = vperm.slane %v622, 5
      %v624 = vlaneseq
      %v625 = vshrl.u32 %v624, 7
      %627 = vset.pattern.permute.xlu0 %v625
      %628 = vperm.xlu0 %627, %v623
      %v629 = vpop.permute.xlu0 %628
      %v630 = vadd.f32 %v629, %v279
      %v631 = vsel %vm300, %v630, -inf
      %v632 = vrot.slane %v631, 4
      %v633 = vmax.f32 %v631, %v632
      %v634 = vrot.slane %v633, 2
      %v635 = vmax.f32 %v633, %v634
      %v636 = vrot.slane %v635, 1
      %v637 = vmax.f32 %v635, %v636
      %v638 = vsub.f32 %v630, %v637
      %v639 = vmul.f32 %v638, 1.442695
      %v640 = vpow.pop %v639
      %v641 = vsel %vm300, %v640, 0.0
      %v642 = vrot.slane %v641, 4
      %v643 = vadd.f32 %v641, %v642
      %v644 = vrot.slane %v643, 2
      %v645 = vadd.f32 %v643, %v644
      %v646 = vrot.slane %v645, 1
      %v647 = vadd.f32 %v645, %v646
      %v648 = vlog2.pop %v647
      %v649 = vmul.f32 %v648, 0.6931472
      %v650 = vadd.f32 %v649, %v637
      %v651 = vadd.f32 %v650, %v280
      %v653 = vrot.slane %v622, 7
      %v655 = vsel %vm454, %v651, %v653
      %v656 = vperm.slane %v655, 6
      %v657 = vlaneseq
      %v658 = vshrl.u32 %v657, 7
      %660 = vset.pattern.permute.xlu0 %v658
      %661 = vperm.xlu0 %660, %v656
      %v662 = vpop.permute.xlu0 %661
      %v663 = vadd.f32 %v662, %v279
      %v664 = vsel %vm300, %v663, -inf
      %v665 = vrot.slane %v664, 4
      %v666 = vmax.f32 %v664, %v665
      %v667 = vrot.slane %v666, 2
      %v668 = vmax.f32 %v666, %v667
      %v669 = vrot.slane %v668, 1
      %v670 = vmax.f32 %v668, %v669
      %v671 = vsub.f32 %v663, %v670
      %v672 = vmul.f32 %v671, 1.442695
      %v673 = vpow.pop %v672
      %v674 = vsel %vm300, %v673, 0.0
      %v675 = vrot.slane %v674, 4
      %v676 = vadd.f32 %v674, %v675
      %v677 = vrot.slane %v676, 2
      %v678 = vadd.f32 %v676, %v677
      %v679 = vrot.slane %v678, 1
      %v680 = vadd.f32 %v678, %v679
      %v681 = vlog2.pop %v680
      %v682 = vmul.f32 %v681, 0.6931472
      %v683 = vadd.f32 %v682, %v670
      %v684 = vadd.f32 %v683, %v280
      %v686 = vrot.slane %v655, 7
      %v688 = vsel %vm454, %v684, %v686
      %689 = vst.msk [vmem:[#allocation2 - $0x7] sm:$0x80] %vm376, %v688
      // Predicated region
      $region45: #{tpu_custom_call.1} parent=39 // pred_check
        %p690 = pneg %p276
      $region46: #{tpu_custom_call.1} parent=39 // pred_check_branch
        %692 = sbr.rel (%p690) target = $region48
      $region47: #{tpu_custom_call.1} parent=39 // pred_region
        %v693 = vmul.f32 %v278, %v417
        %v694 = vsel %vm330, %v693, 0.0
        %695 = vadd.xlane.f32.xlu0 %v694
        %v696 = vpop.xlane.xlu0 %695
        %v697 = vadd.f32 %v373, %v696
        %v699 = vperm.slane %v278, 0
        %v701 = vadd.f32 %v688, %v699
        %v702 = vsel %vm376, %v701, -inf
        %703 = vmax.xlane.f32.xlu0 %v702
        %v704 = vpop.xlane.xlu0 %703
        %v705 = vsub.f32 %v701, %v704
        %v706 = vmul.f32 %v705, 1.442695
        %v707 = vpow.pop %v706
        %v708 = vsel %vm376, %v707, 0.0
        %709 = vadd.xlane.f32.xlu0 %v708
        %v710 = vpop.xlane.xlu0 %709
        %v711 = vlog2.pop %v710
        %v712 = vmul.f32 %v711, 0.6931472
        %v713 = vadd.f32 %v712, %v704
        %v715 = vperm.slane %v713, 7
        %v717 = vsub.f32 %v697, %v715
        %v718 = vadd.f32 %v717, 0.0
        %719 = vst.msk [vmem:[%s274] sm:$0x1] %vm374, %v718
      $region48: #{tpu_custom_call.1} parent=39 // pred_fallthru
        _
      %p720 = scmp.lt.s32.totalorder %s20, 1
      %s721 = scalar_select %p720, %s20, 1
      %s722 = scalar_lea.vmem %s5, %s721
      // Predicated region
      $region49: #{tpu_custom_call.1} parent=39 // pred_check
        %p723 = pneg %p165
      $region50: #{tpu_custom_call.1} parent=39 // pred_check_branch
        %725 = sbr.rel (%p723) target = $region52
      $region51: #{tpu_custom_call.1} parent=39 // pred_region
        _
      $region52: #{tpu_custom_call.1} parent=39 // pred_fallthru
        _
    $region40: #{tpu_custom_call.1} parent=5 // pred_fallthru
      _
    %p726 = scmp.le.s32.totalorder 2, %s11
    // Predicated region
    $region53: #{tpu_custom_call.1} parent=5 // pred_check
      %p727 = pneg %p726
    $region54: #{tpu_custom_call.1} parent=5 // pred_check_branch
      %729 = sbr.rel (%p727) target = $region56
    $region55: #{tpu_custom_call.1} parent=5 // pred_region
      %s730 = ssub.s32 %s11, 2
      // Predicated region
      $region57: #{tpu_custom_call.1} parent=55 // pred_check
        %p731 = pneg %p171
      $region58: #{tpu_custom_call.1} parent=55 // pred_check_branch
        %733 = sbr.rel (%p731) target = $region60
      $region59: #{tpu_custom_call.1} parent=55 // pred_region
        %p734 = scmp.lt.s32.totalorder %s22, 1
        %s735 = scalar_select %p734, %s22, 1
        %s736 = scalar_lea.vmem %s5, %s735
      $region60: #{tpu_custom_call.1} parent=55 // pred_fallthru
        _
    $region56: #{tpu_custom_call.1} parent=5 // pred_fallthru
      _
  $region6: #{tpu_custom_call.1} parent=0 // loop_footer
    %s15 = sadd.s32 1, %s11
  $region7: #{tpu_custom_call.1} parent=0 // loop_footer_branch
    %10 = sbr.rel target = $region3
  $region8: #{tpu_custom_call.1} parent=0 // loop_exit
    _

</llo_original>
